<compile_context>
chip_gen: v5e
topology: v5e:2x2
jax: 0.10.0
libtpu: 0.0.40
codegen_flags: <defaults>
</compile_context>

<pallas_src>
import numpy as np
import jax
import jax.numpy as jnp
from jax import lax
from jax.experimental import pallas as pl
from jax.experimental.pallas import tpu as pltpu

LANE = 128  # TPU lane width; output padded to this for unmasked stores.


# ----------------------------------------------------------------------------
# Glue (host-side, numpy): circuit unitary, folded matrices, PauliZ sign table
# ----------------------------------------------------------------------------
def _rz(a):
    return np.array([[np.exp(-1j * a / 2), 0.0], [0.0, np.exp(1j * a / 2)]],
                    dtype=np.complex128)


def _ry(a):
    return np.array([[np.cos(a / 2), -np.sin(a / 2)],
                     [np.sin(a / 2), np.cos(a / 2)]], dtype=np.complex128)


def _rot(phi, theta, omega):
    # PennyLane qml.Rot(phi, theta, omega) = RZ(omega) RY(theta) RZ(phi)
    return _rz(omega) @ _ry(theta) @ _rz(phi)


def _single_qubit_op(gate, wire, n):
    # wire 0 is the most significant bit (PennyLane convention)
    op = np.array([[1.0 + 0j]])
    for i in range(n):
        op = np.kron(op, gate if i == wire else np.eye(2, dtype=np.complex128))
    return op


def _cnot(control, target, n):
    d = 2 ** n
    m = np.zeros((d, d), dtype=np.complex128)
    for b in range(d):
        cbit = (b >> (n - 1 - control)) & 1
        b2 = b ^ (1 << (n - 1 - target)) if cbit else b
        m[b2, b] = 1.0
    return m


def strongly_entangling_unitary(weights, n_qubits):
    """Full unitary of qml.StronglyEntanglingLayers(weights) on n_qubits wires."""
    layers = weights.shape[0]
    d = 2 ** n_qubits
    u = np.eye(d, dtype=np.complex128)
    for l in range(layers):
        for i in range(n_qubits):
            g = _rot(weights[l, i, 0], weights[l, i, 1], weights[l, i, 2])
            u = _single_qubit_op(g, i, n_qubits) @ u
        if n_qubits > 1:
            r = (l % (n_qubits - 1)) + 1
            for i in range(n_qubits):
                u = _cnot(i, (i + r) % n_qubits, n_qubits) @ u
    return u


def pauliz_sign_table(n_qubits, width):
    """(D, width) table: col i holds the PauliZ sign of wire i, cols >= Q are 0."""
    d = 2 ** n_qubits
    z = np.zeros((d, width), dtype=np.float32)
    for b in range(d):
        for i in range(n_qubits):
            bit = (b >> (n_qubits - 1 - i)) & 1
            z[b, i] = 1.0 - 2.0 * bit
    return z


def folded_circuit_matrices(weights_np, n_qubits, width=LANE):
    """Fold the RX-embedding phase into the circuit unitary.

    psi_in(b, :) = mag(b, :) * phase, phase(d) = (-i)^popcount(d) (data indep.)
    psi_out row  = psi_in row @ U.T   = mag row @ (diag(phase) @ U.T)
    Returns:
      m_packed : (D, 2D) f32 = [Re(V) | Im(V)],  V = diag(phase) @ U.T
      z_stack  : (2D, width) f32 = [Z; Z]  so that  (out_r^2 | out_i^2) @ z_stack
                 = sum_d |psi_out(d)|^2 * Z_sign(d, wire)
    """
    d = 2 ** n_qubits
    u = strongly_entangling_unitary(weights_np, n_qubits)
    pop = np.array([bin(b).count("1") for b in range(d)])
    phase = (-1j) ** pop                                    # RX embedding phase
    v = phase[:, None] * u.T                                # diag(phase) @ U.T
    m_packed = np.concatenate([np.real(v), np.imag(v)], axis=1).astype(np.float32)
    z = pauliz_sign_table(n_qubits, width)
    z_stack = np.concatenate([z, z], axis=0).astype(np.float32)
    return m_packed, z_stack


# ----------------------------------------------------------------------------
# Pallas kernel: RX product-state magnitudes + 2 MXU matmuls + Z expectations
# ----------------------------------------------------------------------------
def qnn_kernel(x_ref, m_ref, z_ref, out_ref):
    a = x_ref[...]                                  # (Bblk, Q) angles
    blk, nq = a.shape
    dsz = m_ref.shape[0]                            # D = 2^Q

    # RX(a)|0> magnitudes: cos(a/2) for bit 0, sin(a/2) for bit 1 (EUP).
    c = jnp.cos(a * 0.5)
    s = jnp.sin(a * 0.5)

    # Product-state magnitudes via basis-index bit masks (VPU):
    #   mag(b, d) = prod_i (bit_i(d) ? sin(a_i/2) : cos(a_i/2))
    idx = lax.broadcasted_iota(jnp.int32, (1, dsz), 1)
    mag = None
    for i in range(nq):                             # static, tiny loop (Q iters)
        bit = (idx >> (nq - 1 - i)) & 1             # (1, D)
        bit_f = jnp.broadcast_to(bit.astype(jnp.float32), (blk, dsz))
        ci = jnp.broadcast_to(c[:, i:i + 1], (blk, dsz))
        si = jnp.broadcast_to(s[:, i:i + 1], (blk, dsz))
        fac = ci + (si - ci) * bit_f
        mag = fac if mag is None else mag * fac

    # Single packed complex matmul (phase already folded into m_ref):
    #   out_packed = mag @ [Re(V) | Im(V)]  -> (Bblk, 2D) = [out_r | out_i]
    out_packed = jnp.dot(mag, m_ref[...], preferred_element_type=jnp.float32)

    # |amplitude|^2 packed (VPU), then Z-expectation contraction (MXU),
    # lane-dense 128-wide output slab; cols >= Q of z_ref are zero.
    sq = out_packed * out_packed
    out_ref[...] = jnp.dot(sq, z_ref[...], preferred_element_type=jnp.float32)


def _round_up(v, m):
    return ((v + m - 1) // m) * m


def quantum_classifier_forward(x, weights, *, batch_block=1024):
    """Forward pass of quantum_classifier. x: (B, ...); returns (B, qubits)."""
    n_qubits = weights.shape[1]
    d = 2 ** n_qubits
    b = x.shape[0]

    # x.reshape(x.shape[0], -1)
    x_flat = x.reshape(b, -1).astype(jnp.float32)
    assert x_flat.shape[1] == n_qubits, "flattened features must equal number of qubits"

    # --- glue: data-independent folded circuit matrices (host-side numpy) -----
    # TODO(synk): the PennyLane circuit-to-unitary fold is parameter setup done
    # host-side; it is not expressible as a Pallas kernel (and doesn't need to be).
    m_np, z_np = folded_circuit_matrices(
        np.asarray(weights, dtype=np.float64), n_qubits, LANE)
    m_packed = jnp.asarray(m_np)          # (D, 2D)
    z_stack = jnp.asarray(z_np)           # (2D, 128)

    # --- batch tiling: sublane-aligned blocks, pipelined over a 1-D grid ------
    if b > batch_block:
        bblk = batch_block
    else:
        bblk = _round_up(max(b, 1), 8)
    bpad = _round_up(b, bblk)
    if bpad != b:
        x_flat = jnp.concatenate(
            [x_flat, jnp.zeros((bpad - b, n_qubits), jnp.float32)], axis=0)

    grid = (bpad // bblk,)

    out_padded = pl.pallas_call(
        qnn_kernel,
        out_shape=jax.ShapeDtypeStruct((bpad, LANE), jnp.float32),
        grid_spec=pltpu.PrefetchScalarGridSpec(
            num_scalar_prefetch=0,
            grid=grid,
            in_specs=[
                pl.BlockSpec((bblk, n_qubits), lambda i: (i, 0)),   # angles (streamed)
                pl.BlockSpec((d, 2 * d), lambda i: (0, 0)),         # folded U (resident)
                pl.BlockSpec((2 * d, LANE), lambda i: (0, 0)),      # Z signs (resident)
            ],
            out_specs=pl.BlockSpec((bblk, LANE), lambda i: (i, 0)),
        ),
        compiler_params=pltpu.CompilerParams(
            dimension_semantics=("parallel",)),  # v7x: shard batch over 2 TCs
    )(x_flat, m_packed, z_stack)

    return out_padded[:b, :n_qubits]


# ----------------------------------------------------------------------------
# Pure-JAX reference (explicit complex product state; no phase folding)
# ----------------------------------------------------------------------------
def _reference(x_flat, weights):
    b, n_qubits = x_flat.shape
    psi = jnp.ones((b, 1), dtype=jnp.complex64)
    for i in range(n_qubits):
        a = x_flat[:, i]
        q = jnp.stack([jnp.cos(a / 2).astype(jnp.complex64),
                       (-1j) * jnp.sin(a / 2).astype(jnp.complex64)], axis=1)
        psi = (psi[:, :, None] * q[:, None, :]).reshape(b, -1)
    u = strongly_entangling_unitary(np.asarray(weights, dtype=np.float64), n_qubits)
    ut_r = jnp.asarray(np.real(u.T), jnp.float32)
    ut_i = jnp.asarray(np.imag(u.T), jnp.float32)
    pr = jnp.real(psi).astype(jnp.float32)
    pi = jnp.imag(psi).astype(jnp.float32)
    out_r = pr @ ut_r - pi @ ut_i
    out_i = pr @ ut_i + pi @ ut_r
    probs = out_r ** 2 + out_i ** 2
    z = jnp.asarray(pauliz_sign_table(n_qubits, n_qubits))
    return probs @ z


if __name__ == "__main__":
    layers, qubits = 2, 4
    batch = 2

    key = jax.random.PRNGKey(0)
    kx, kw = jax.random.split(key)

    # Input shaped like a small feature map; forward flattens it to (batch, qubits).
    x = jax.random.normal(kx, (batch, 1, 2, 2), dtype=jnp.float32)
    # Deterministic circuit weights, shape (layers, qubits, 3), angles in [0, 2pi).
    weights = jax.random.uniform(kw, (layers, qubits, 3), minval=0.0,
                                 maxval=2.0 * np.pi, dtype=jnp.float32)

    out = quantum_classifier_forward(x, weights)
    out = jax.block_until_ready(out)

    ref = _reference(x.reshape(batch, -1).astype(jnp.float32), weights)
    assert out.shape == (batch, qubits)
    assert np.allclose(np.asarray(out), np.asarray(ref), atol=1e-3, rtol=1e-3), \
        "mismatch vs reference"

    print("KERNEL_OK")
</pallas_src>

<mosaic_0001>
module attributes {stable_mosaic.version = 11 : i64} {
  func.func @qnn_kernel(%arg0: i32, %arg1: memref<8x4xf32, #tpu.memory_space<vmem>>, %arg2: memref<16x32xf32, #tpu.memory_space<vmem>>, %arg3: memref<32x128xf32, #tpu.memory_space<vmem>>, %arg4: memref<8x128xf32, #tpu.memory_space<vmem>>) attributes {dimension_semantics = [#tpu.dimension_semantics<parallel>], iteration_bounds = array<i64: 1>, scalar_prefetch = 0 : i64, scratch_operands = 0 : i64, tpu.core_type = #tpu.core_type<tc>, window_params = [{transform_indices = @transform_0, window_bounds = array<i64: 8, 4>}, {pipeline_mode = #tpu.pipeline_mode<synchronous>, transform_indices = @transform_1, window_bounds = array<i64: 16, 32>}, {pipeline_mode = #tpu.pipeline_mode<synchronous>, transform_indices = @transform_2, window_bounds = array<i64: 32, 128>}, {transform_indices = @transform_3, window_bounds = array<i64: 8, 128>}]} {
    %c0 = arith.constant 0 : index
    %c0_0 = arith.constant 0 : index
    %0 = vector.load %arg1[%c0, %c0_0] : memref<8x4xf32, #tpu.memory_space<vmem>>, vector<8x4xf32>
    %cst = arith.constant 5.000000e-01 : f32
    %1 = vector.broadcast %cst : f32 to vector<8x4xf32>
    %2 = arith.mulf %0, %1 : vector<8x4xf32>
    %3 = math.cos %2 : vector<8x4xf32>
    %cst_1 = arith.constant 5.000000e-01 : f32
    %4 = vector.broadcast %cst_1 : f32 to vector<8x4xf32>
    %5 = arith.mulf %0, %4 : vector<8x4xf32>
    %6 = math.sin %5 : vector<8x4xf32>
    %7 = tpu.iota {dimensions = array<i32: 1>} : vector<1x16xi32>
    %c3_i32 = arith.constant 3 : i32
    %8 = vector.broadcast %c3_i32 : i32 to vector<1x16xi32>
    %9 = arith.shrsi %7, %8 : vector<1x16xi32>
    %c1_i32 = arith.constant 1 : i32
    %10 = vector.broadcast %c1_i32 : i32 to vector<1x16xi32>
    %11 = arith.andi %9, %10 : vector<1x16xi32>
    %12 = arith.sitofp %11 : vector<1x16xi32> to vector<1x16xf32>
    %13 = vector.shape_cast %12 : vector<1x16xf32> to vector<1x16xf32>
    %14 = vector.broadcast %13 : vector<1x16xf32> to vector<8x16xf32>
    %15 = vector.extract_strided_slice %3 {offsets = [0, 0], sizes = [8, 1], strides = [1, 1]} : vector<8x4xf32> to vector<8x1xf32>
    %16 = vector.shape_cast %15 : vector<8x1xf32> to vector<8x1xf32>
    %17 = vector.broadcast %16 : vector<8x1xf32> to vector<8x16xf32>
    %18 = vector.extract_strided_slice %6 {offsets = [0, 0], sizes = [8, 1], strides = [1, 1]} : vector<8x4xf32> to vector<8x1xf32>
    %19 = vector.shape_cast %18 : vector<8x1xf32> to vector<8x1xf32>
    %20 = vector.broadcast %19 : vector<8x1xf32> to vector<8x16xf32>
    %21 = arith.subf %20, %17 : vector<8x16xf32>
    %22 = arith.mulf %21, %14 : vector<8x16xf32>
    %23 = arith.addf %17, %22 : vector<8x16xf32>
    %c2_i32 = arith.constant 2 : i32
    %24 = vector.broadcast %c2_i32 : i32 to vector<1x16xi32>
    %25 = arith.shrsi %7, %24 : vector<1x16xi32>
    %c1_i32_2 = arith.constant 1 : i32
    %26 = vector.broadcast %c1_i32_2 : i32 to vector<1x16xi32>
    %27 = arith.andi %25, %26 : vector<1x16xi32>
    %28 = arith.sitofp %27 : vector<1x16xi32> to vector<1x16xf32>
    %29 = vector.shape_cast %28 : vector<1x16xf32> to vector<1x16xf32>
    %30 = vector.broadcast %29 : vector<1x16xf32> to vector<8x16xf32>
    %31 = vector.extract_strided_slice %3 {offsets = [0, 1], sizes = [8, 1], strides = [1, 1]} : vector<8x4xf32> to vector<8x1xf32>
    %32 = vector.shape_cast %31 : vector<8x1xf32> to vector<8x1xf32>
    %33 = vector.broadcast %32 : vector<8x1xf32> to vector<8x16xf32>
    %34 = vector.extract_strided_slice %6 {offsets = [0, 1], sizes = [8, 1], strides = [1, 1]} : vector<8x4xf32> to vector<8x1xf32>
    %35 = vector.shape_cast %34 : vector<8x1xf32> to vector<8x1xf32>
    %36 = vector.broadcast %35 : vector<8x1xf32> to vector<8x16xf32>
    %37 = arith.subf %36, %33 : vector<8x16xf32>
    %38 = arith.mulf %37, %30 : vector<8x16xf32>
    %39 = arith.addf %33, %38 : vector<8x16xf32>
    %40 = arith.mulf %23, %39 : vector<8x16xf32>
    %c1_i32_3 = arith.constant 1 : i32
    %41 = vector.broadcast %c1_i32_3 : i32 to vector<1x16xi32>
    %42 = arith.shrsi %7, %41 : vector<1x16xi32>
    %c1_i32_4 = arith.constant 1 : i32
    %43 = vector.broadcast %c1_i32_4 : i32 to vector<1x16xi32>
    %44 = arith.andi %42, %43 : vector<1x16xi32>
    %45 = arith.sitofp %44 : vector<1x16xi32> to vector<1x16xf32>
    %46 = vector.shape_cast %45 : vector<1x16xf32> to vector<1x16xf32>
    %47 = vector.broadcast %46 : vector<1x16xf32> to vector<8x16xf32>
    %48 = vector.extract_strided_slice %3 {offsets = [0, 2], sizes = [8, 1], strides = [1, 1]} : vector<8x4xf32> to vector<8x1xf32>
    %49 = vector.shape_cast %48 : vector<8x1xf32> to vector<8x1xf32>
    %50 = vector.broadcast %49 : vector<8x1xf32> to vector<8x16xf32>
    %51 = vector.extract_strided_slice %6 {offsets = [0, 2], sizes = [8, 1], strides = [1, 1]} : vector<8x4xf32> to vector<8x1xf32>
    %52 = vector.shape_cast %51 : vector<8x1xf32> to vector<8x1xf32>
    %53 = vector.broadcast %52 : vector<8x1xf32> to vector<8x16xf32>
    %54 = arith.subf %53, %50 : vector<8x16xf32>
    %55 = arith.mulf %54, %47 : vector<8x16xf32>
    %56 = arith.addf %50, %55 : vector<8x16xf32>
    %57 = arith.mulf %40, %56 : vector<8x16xf32>
    %c0_i32 = arith.constant 0 : i32
    %58 = vector.broadcast %c0_i32 : i32 to vector<1x16xi32>
    %59 = arith.shrsi %7, %58 : vector<1x16xi32>
    %c1_i32_5 = arith.constant 1 : i32
    %60 = vector.broadcast %c1_i32_5 : i32 to vector<1x16xi32>
    %61 = arith.andi %59, %60 : vector<1x16xi32>
    %62 = arith.sitofp %61 : vector<1x16xi32> to vector<1x16xf32>
    %63 = vector.shape_cast %62 : vector<1x16xf32> to vector<1x16xf32>
    %64 = vector.broadcast %63 : vector<1x16xf32> to vector<8x16xf32>
    %65 = vector.extract_strided_slice %3 {offsets = [0, 3], sizes = [8, 1], strides = [1, 1]} : vector<8x4xf32> to vector<8x1xf32>
    %66 = vector.shape_cast %65 : vector<8x1xf32> to vector<8x1xf32>
    %67 = vector.broadcast %66 : vector<8x1xf32> to vector<8x16xf32>
    %68 = vector.extract_strided_slice %6 {offsets = [0, 3], sizes = [8, 1], strides = [1, 1]} : vector<8x4xf32> to vector<8x1xf32>
    %69 = vector.shape_cast %68 : vector<8x1xf32> to vector<8x1xf32>
    %70 = vector.broadcast %69 : vector<8x1xf32> to vector<8x16xf32>
    %71 = arith.subf %70, %67 : vector<8x16xf32>
    %72 = arith.mulf %71, %64 : vector<8x16xf32>
    %73 = arith.addf %67, %72 : vector<8x16xf32>
    %74 = arith.mulf %57, %73 : vector<8x16xf32>
    %c0_6 = arith.constant 0 : index
    %c0_7 = arith.constant 0 : index
    %75 = vector.load %arg2[%c0_6, %c0_7] : memref<16x32xf32, #tpu.memory_space<vmem>>, vector<16x32xf32>
    %cst_8 = arith.constant dense<0.000000e+00> : vector<8x32xf32>
    %76 = tpu.matmul %74, %75, %cst_8 {dimension_numbers = #tpu.dot_dimension_numbers<[1], [0], [0], [1], [0, 0, 1, 1], [], []>} : vector<8x16xf32>, vector<16x32xf32>, vector<8x32xf32> -> vector<8x32xf32>
    %77 = arith.mulf %76, %76 : vector<8x32xf32>
    %c0_9 = arith.constant 0 : index
    %c0_10 = arith.constant 0 : index
    %78 = vector.load %arg3[%c0_9, %c0_10] : memref<32x128xf32, #tpu.memory_space<vmem>>, vector<32x128xf32>
    %cst_11 = arith.constant dense<0.000000e+00> : vector<8x128xf32>
    %79 = tpu.matmul %77, %78, %cst_11 {dimension_numbers = #tpu.dot_dimension_numbers<[1], [0], [0], [1], [0, 0, 1, 1], [], []>} : vector<8x32xf32>, vector<32x128xf32>, vector<8x128xf32> -> vector<8x128xf32>
    %c0_12 = arith.constant 0 : index
    %c0_13 = arith.constant 0 : index
    %80 = vector.load %arg4[%c0_12, %c0_13] : memref<8x128xf32, #tpu.memory_space<vmem>>, vector<8x128xf32>
    tpu.vector_store %arg4[%c0_12, %c0_13], %79 {strides = array<i32>} : memref<8x128xf32, #tpu.memory_space<vmem>>, vector<8x128xf32>,
    return
  }
  func.func @transform_0(%arg0: i32) -> (i32, i32) {
    %c0_i32 = arith.constant 0 : i32
    %c0_i32_0 = arith.constant 0 : i32
    return %arg0, %c0_i32 : i32, i32
  }
  func.func @transform_1(%arg0: i32) -> (i32, i32) {
    %c0_i32 = arith.constant 0 : i32
    %c0_i32_0 = arith.constant 0 : i32
    %c0_i32_1 = arith.constant 0 : i32
    return %c0_i32, %c0_i32_0 : i32, i32
  }
  func.func @transform_2(%arg0: i32) -> (i32, i32) {
    %c0_i32 = arith.constant 0 : i32
    %c0_i32_0 = arith.constant 0 : i32
    %c0_i32_1 = arith.constant 0 : i32
    return %c0_i32, %c0_i32_0 : i32, i32
  }
  func.func @transform_3(%arg0: i32) -> (i32, i32) {
    %c0_i32 = arith.constant 0 : i32
    %c0_i32_0 = arith.constant 0 : i32
    return %arg0, %c0_i32 : i32, i32
  }
}

</mosaic_0001>

<llo_original>
// kernel: tpu_custom_call.1
$region0: #{tpu_custom_call.1}
  #allocation0 [shape = 'u32[]', space=smem, size = 0x4, offset = 0x4, fixed_abs, tag = 'smem constant byte address 0x4 - core index']
  #allocation1 [shape = 'u32[72,128]{1,0:T(1,128)}', space=vmem, size = 0x9000, scoped, tag = 'internal scratch']
  %s0 = inlined_call_operand.vmem [shape: f32[8,4], index: 0, kind: input, shape index: {}]
  %s1 = inlined_call_operand.hbm [shape: f32[16,32], index: 1, kind: input, shape index: {}]
  %s2 = inlined_call_operand.hbm [shape: f32[32,128], index: 2, kind: input, shape index: {}]
  %s3 = inlined_call_operand.hbm [shape: f32[8,128], index: 3, kind: output, shape index: {}]
  %s4 = sld [smem:[#allocation0]]
  $region30: #{tpu_custom_call.1} parent=0
    _
  %s6 = ssub.s32 1, %s4
  %s7 = scalar_select 0, %s6, %s4
  $region1: #{tpu_custom_call.1} parent=0
    #allocation2 [shape = 'u8[8192]{0}', space=vmem, size = 0x2000, scoped, tag = 'input window, operand 1, single buffered']
    #allocation3 [shape = 's32[1]{0}', space=sflag, size = 0x4, scoped, tag = 'scoped memory for tpu_custom_call.1']
    #allocation4 [shape = 's32[1]{0}', space=sflag, size = 0x4, scoped, tag = 'scoped memory for tpu_custom_call.1']
    #allocation5 [shape = 'u8[16384]{0}', space=vmem, size = 0x4000, scoped, tag = 'input window, operand 2, single buffered']
    #allocation6 [shape = 's32[1]{0}', space=sflag, size = 0x4, scoped, tag = 'scoped memory for tpu_custom_call.1']
    #allocation7 [shape = 'u8[4096]{0}', space=vmem, size = 0x1000, scoped, tag = 'output window, operand 0, single buffered']
    %8 = vsyncpa [#allocation3], 0
    %9 = vsyncpa [#allocation6], 0
    %10 = vsyncpa [#allocation4], 0
    // Predicated region
    $region2: #{tpu_custom_call.1} parent=1 // pred_check
      _
    $region3: #{tpu_custom_call.1} parent=1 // pred_check_branch
      %12 = sbr.rel (0) target = $region5
    $region4: #{tpu_custom_call.1} parent=1 // pred_region
      _
    $region5: #{tpu_custom_call.1} parent=1 // pred_fallthru
      _
    // Predicated region
    $region6: #{tpu_custom_call.1} parent=1 // pred_check
      _
    $region7: #{tpu_custom_call.1} parent=1 // pred_check_branch
      %14 = sbr.rel (0) target = $region9
    $region8: #{tpu_custom_call.1} parent=1 // pred_region
      %16 = vsyncadd [#allocation3], 0
      %s17 = sshll.u32 %s1, 4
      %s18 = int_to_ptr.hbm [resolvable:$true] %s17
      %s19 = sshll.u32 [#allocation2], 4
      %s20 = int_to_ptr.vmem [resolvable:$true] %s19
      %25 = dma.hbm_to_vmem [thread:$0]  %s18, 256, %s20, [#allocation3], 128, 128, 8
    $region9: #{tpu_custom_call.1} parent=1 // pred_fallthru
      _
    // Predicated region
    $region10: #{tpu_custom_call.1} parent=1 // pred_check
      _
    $region11: #{tpu_custom_call.1} parent=1 // pred_check_branch
      %27 = sbr.rel (0) target = $region13
    $region12: #{tpu_custom_call.1} parent=1 // pred_region
      %29 = vsyncadd [#allocation6], 0
      %s30 = sshll.u32 %s2, 4
      %s31 = int_to_ptr.hbm [resolvable:$true] %s30
      %s32 = sshll.u32 [#allocation5], 4
      %s33 = int_to_ptr.vmem [resolvable:$true] %s32
      %38 = dma.hbm_to_vmem [thread:$0]  %s31, 512, %s33, [#allocation6], 128, 128, 8
    $region13: #{tpu_custom_call.1} parent=1 // pred_fallthru
      _
    // Predicated region
    $region14: #{tpu_custom_call.1} parent=1 // pred_check
      _
    $region15: #{tpu_custom_call.1} parent=1 // pred_check_branch
      %40 = sbr.rel (0) target = $region17
    $region16: #{tpu_custom_call.1} parent=1 // pred_region
      %42 = dma.done [#allocation3], 256
    $region17: #{tpu_custom_call.1} parent=1 // pred_fallthru
      _
    // Predicated region
    $region18: #{tpu_custom_call.1} parent=1 // pred_check
      _
    $region19: #{tpu_custom_call.1} parent=1 // pred_check_branch
      %44 = sbr.rel (0) target = $region21
    $region20: #{tpu_custom_call.1} parent=1 // pred_region
      %46 = dma.done [#allocation6], 512
    $region21: #{tpu_custom_call.1} parent=1 // pred_fallthru
      _
    %v47 = vld [vmem:[%s0] sm:$0xff]
    %v48 = vmul.f32 %v47, 0.5
    %v49 = vand.u32 2147483647, %v48
    %vm50 = vcmp.le.f32.partialorder %v49, 0.7853982
    %vm51 = vcmp.lt.s32.totalorder %v48, 0
    %v52 = vand.u32 %v48, 2139095040
    %v53 = vshrl.u32 %v52, 23
    %v54 = vsub.s32 %v53, 127
    %v55 = vand.u32 2147483647, %v48
    %v56 = vand.u32 %v55, 8388607
    %v57 = vor.u32 %v56, 8388608
    %v58 = vsub.s32 0, %v57
    %v59 = vadd.s32 %v54, 1
    %vm60 = vcmp.gt.s32.totalorder %v59, 0
    %v61 = vsel %vm60, %v59, 0
    %v62 = vshrl.u32 %v61, 5
    %v63 = vand.u32 %v61, 31
    %v64 = vsub.s32 32, %v63
    %v65 = vshrl.u32 683565275, %v64
    %v66 = vshll.u32 683565275, %v63
    %v67 = vshrl.u32 2475754826, %v64
    %v68 = vor.u32 %v66, %v67
    %v69 = vshll.u32 2475754826, %v63
    %v70 = vshrl.u32 2131351028, %v64
    %v71 = vor.u32 %v69, %v70
    %v72 = vshll.u32 2131351028, %v63
    %v73 = vshrl.u32 2102212464, %v64
    %v74 = vor.u32 %v72, %v73
    %v75 = vshll.u32 2102212464, %v63
    %v76 = vshrl.u32 920167782, %v64
    %v77 = vor.u32 %v75, %v76
    %v78 = vshll.u32 920167782, %v63
    %v79 = vshrl.u32 1326507024, %v64
    %v80 = vor.u32 %v78, %v79
    %vm81 = vcmp.lt.s32.totalorder %v62, 1
    %vm82 = vcmp.lt.s32.totalorder %v62, 2
    %vm83 = vcmp.lt.s32.totalorder %v62, 3
    %vm84 = vcmp.lt.s32.totalorder %v62, 4
    %v85 = vsel %vm81, %v65, %v68
    %v86 = vsel %vm84, %v74, 2102212464
    %v87 = vsel %vm83, %v71, %v86
    %v88 = vsel %vm82, %v85, %v87
    %v89 = vsel %vm81, %v68, %v71
    %v90 = vsel %vm84, %v77, 920167782
    %v91 = vsel %vm83, %v74, %v90
    %v92 = vsel %vm82, %v89, %v91
    %v93 = vsel %vm81, %v71, %v74
    %v94 = vsel %vm84, %v80, 1326507024
    %v95 = vsel %vm83, %v77, %v94
    %v96 = vsel %vm82, %v93, %v95
    %v97 = vshll.u32 %v57, 8
    %v98 = vand.u32 %v97, 65535
    %v99 = vshrl.u32 %v97, 16
    %v100 = vand.u32 %v96, 65535
    %v101 = vshrl.u32 %v96, 16
    %v102 = vmul.u32 %v98, %v100
    %v103 = vmul.u32 %v98, %v101
    %v104 = vmul.u32 %v99, %v100
    %v105 = vmul.u32 %v99, %v101
    %v106 = vshll.u32 %v103, 16
    %v107 = vshrl.u32 %v103, 16
    %v108 = vshll.u32 %v104, 16
    %v109 = vshrl.u32 %v104, 16
    %vm110 = vc.u32 %v102, %v106
    %v111 = vsel %vm110, 1, 0
    %v112 = vadd.s32 %v102, %v106
    %v113 = vadd.s32 %v105, %v111
    %vm114 = vc.u32 %v112, %v108
    %v115 = vsel %vm114, 1, 0
    %v116 = vadd.s32 %v112, %v108
    %v117 = vadd.s32 %v113, %v115
    %v118 = vadd.s32 %v117, %v107
    %v119 = vadd.s32 %v118, %v109
    %v120 = vand.u32 %v97, 65535
    %v121 = vshrl.u32 %v97, 16
    %v122 = vand.u32 %v92, 65535
    %v123 = vshrl.u32 %v92, 16
    %v124 = vmul.u32 %v120, %v122
    %v125 = vmul.u32 %v120, %v123
    %v126 = vmul.u32 %v121, %v122
    %v127 = vmul.u32 %v121, %v123
    %v128 = vshll.u32 %v125, 16
    %v129 = vshrl.u32 %v125, 16
    %v130 = vshll.u32 %v126, 16
    %v131 = vshrl.u32 %v126, 16
    %vm132 = vc.u32 %v124, %v128
    %v133 = vsel %vm132, 1, 0
    %v134 = vadd.s32 %v124, %v128
    %v135 = vadd.s32 %v127, %v133
    %vm136 = vc.u32 %v134, %v130
    %v137 = vsel %vm136, 1, 0
    %v138 = vadd.s32 %v134, %v130
    %v139 = vadd.s32 %v135, %v137
    %v140 = vadd.s32 %v139, %v129
    %v141 = vadd.s32 %v140, %v131
    %v142 = vmul.u32 %v97, %v88
    %v143 = vadd.s32 %v119, %v138
    %vm144 = vc.u32 %v119, %v138
    %v145 = vadd.s32 %v141, 1
    %v146 = vsel %vm144, %v145, %v141
    %v147 = vadd.s32 %v142, %v146
    %v148 = vadd.s32 %v147, 536870912
    %v149 = vshrl.u32 %v148, 30
    %v150 = vshll.u32 %v149, 30
    %v151 = vsub.s32 %v147, %v150
    %vm152 = vcmp.lt.s32.totalorder %v151, 0
    %v153 = vsub.s32 0, %v151
    %v154 = vsel %vm152, %v153, %v151
    %v155 = vclz %v154
    %v156 = vsub.s32 %v155, 2
    %vm157 = vcmp.gt.s32.totalorder 0, %v156
    %v158 = vsel %vm157, 0, %v156
    %v159 = vsub.s32 32, %v158
    %v160 = vshll.u32 %v151, %v158
    %v161 = vshrl.u32 %v143, %v159
    %v162 = vor.u32 %v160, %v161
    %v163 = vsub.s32 4294967266, %v158
    %v164 = vadd.s32 %v163, 127
    %v165 = vshll.u32 %v164, 23
    %v166 = vor.u32 4788187, %v165
    %v167 = vand.u32 2147483647, %v166
    %v169 = vcvt.s32.f32 %v162
    %v170 = vmul.f32 %v169, %v167
    %v171 = vxor.u32 %v170, 2147483648
    %v172 = vsel %vm51, %v171, %v170
    %v173 = vsub.s32 4, %v149
    %v174 = vsel %vm51, %v173, %v149
    %v175 = vsel %vm50, %v48, %v172
    %v176 = vsel %vm50, 0, %v174
    %v177 = vmul.f32 %v175, %v175
    %v178 = vmul.f32 %v177, -0.001358992
    %v179 = vadd.f32 %v178, 0.041655596
    %v180 = vmul.f32 %v177, %v179
    %v181 = vadd.f32 %v180, -0.4999988
    %v182 = vmul.f32 %v177, %v181
    %v183 = vadd.f32 1.0, %v182
    %v184 = vmul.f32 %v175, %v175
    %v185 = vmul.f32 %v184, -0.00019511016
    %v186 = vadd.f32 %v185, 0.008332121
    %v187 = vmul.f32 %v184, %v186
    %v188 = vadd.f32 %v187, -0.16666654
    %v189 = vmul.f32 %v184, %v188
    %v190 = vadd.f32 %v189, 1.0
    %v191 = vmul.f32 %v190, %v175
    %vm192 = vweird.f32 %v48
    %v193 = vand.u32 %v176, 3
    %vm194 = vcmp.lt.s32.totalorder %v193, 2
    %vm195 = vcmp.eq.s32.totalorder %v193, 0
    %v196 = vxor.u32 %v191, 2147483648
    %v197 = vsel %vm195, %v183, %v196
    %vm198 = vcmp.eq.s32.totalorder %v193, 2
    %v199 = vxor.u32 %v183, 2147483648
    %v200 = vsel %vm198, %v199, %v191
    %v201 = vsel %vm194, %v197, %v200
    %v202 = vsel %vm192, nan, %v201
    %v203 = vand.u32 2147483647, %v48
    %vm204 = vcmp.le.f32.partialorder %v203, 0.7853982
    %vm205 = vcmp.lt.s32.totalorder %v48, 0
    %v206 = vand.u32 %v48, 2139095040
    %v207 = vshrl.u32 %v206, 23
    %v208 = vsub.s32 %v207, 127
    %v209 = vand.u32 2147483647, %v48
    %v210 = vand.u32 %v209, 8388607
    %v211 = vor.u32 %v210, 8388608
    %v212 = vsub.s32 0, %v211
    %v213 = vadd.s32 %v208, 1
    %vm214 = vcmp.gt.s32.totalorder %v213, 0
    %v215 = vsel %vm214, %v213, 0
    %v216 = vshrl.u32 %v215, 5
    %v217 = vand.u32 %v215, 31
    %v218 = vsub.s32 32, %v217
    %v219 = vshrl.u32 683565275, %v218
    %v220 = vshll.u32 683565275, %v217
    %v221 = vshrl.u32 2475754826, %v218
    %v222 = vor.u32 %v220, %v221
    %v223 = vshll.u32 2475754826, %v217
    %v224 = vshrl.u32 2131351028, %v218
    %v225 = vor.u32 %v223, %v224
    %v226 = vshll.u32 2131351028, %v217
    %v227 = vshrl.u32 2102212464, %v218
    %v228 = vor.u32 %v226, %v227
    %v229 = vshll.u32 2102212464, %v217
    %v230 = vshrl.u32 920167782, %v218
    %v231 = vor.u32 %v229, %v230
    %v232 = vshll.u32 920167782, %v217
    %v233 = vshrl.u32 1326507024, %v218
    %v234 = vor.u32 %v232, %v233
    %vm235 = vcmp.lt.s32.totalorder %v216, 1
    %vm236 = vcmp.lt.s32.totalorder %v216, 2
    %vm237 = vcmp.lt.s32.totalorder %v216, 3
    %vm238 = vcmp.lt.s32.totalorder %v216, 4
    %v239 = vsel %vm235, %v219, %v222
    %v240 = vsel %vm238, %v228, 2102212464
    %v241 = vsel %vm237, %v225, %v240
    %v242 = vsel %vm236, %v239, %v241
    %v243 = vsel %vm235, %v222, %v225
    %v244 = vsel %vm238, %v231, 920167782
    %v245 = vsel %vm237, %v228, %v244
    %v246 = vsel %vm236, %v243, %v245
    %v247 = vsel %vm235, %v225, %v228
    %v248 = vsel %vm238, %v234, 1326507024
    %v249 = vsel %vm237, %v231, %v248
    %v250 = vsel %vm236, %v247, %v249
    %v251 = vshll.u32 %v211, 8
    %v252 = vand.u32 %v251, 65535
    %v253 = vshrl.u32 %v251, 16
    %v254 = vand.u32 %v250, 65535
    %v255 = vshrl.u32 %v250, 16
    %v256 = vmul.u32 %v252, %v254
    %v257 = vmul.u32 %v252, %v255
    %v258 = vmul.u32 %v253, %v254
    %v259 = vmul.u32 %v253, %v255
    %v260 = vshll.u32 %v257, 16
    %v261 = vshrl.u32 %v257, 16
    %v262 = vshll.u32 %v258, 16
    %v263 = vshrl.u32 %v258, 16
    %vm264 = vc.u32 %v256, %v260
    %v265 = vsel %vm264, 1, 0
    %v266 = vadd.s32 %v256, %v260
    %v267 = vadd.s32 %v259, %v265
    %vm268 = vc.u32 %v266, %v262
    %v269 = vsel %vm268, 1, 0
    %v270 = vadd.s32 %v266, %v262
    %v271 = vadd.s32 %v267, %v269
    %v272 = vadd.s32 %v271, %v261
    %v273 = vadd.s32 %v272, %v263
    %v274 = vand.u32 %v251, 65535
    %v275 = vshrl.u32 %v251, 16
    %v276 = vand.u32 %v246, 65535
    %v277 = vshrl.u32 %v246, 16
    %v278 = vmul.u32 %v274, %v276
    %v279 = vmul.u32 %v274, %v277
    %v280 = vmul.u32 %v275, %v276
    %v281 = vmul.u32 %v275, %v277
    %v282 = vshll.u32 %v279, 16
    %v283 = vshrl.u32 %v279, 16
    %v284 = vshll.u32 %v280, 16
    %v285 = vshrl.u32 %v280, 16
    %vm286 = vc.u32 %v278, %v282
    %v287 = vsel %vm286, 1, 0
    %v288 = vadd.s32 %v278, %v282
    %v289 = vadd.s32 %v281, %v287
    %vm290 = vc.u32 %v288, %v284
    %v291 = vsel %vm290, 1, 0
    %v292 = vadd.s32 %v288, %v284
    %v293 = vadd.s32 %v289, %v291
    %v294 = vadd.s32 %v293, %v283
    %v295 = vadd.s32 %v294, %v285
    %v296 = vmul.u32 %v251, %v242
    %v297 = vadd.s32 %v273, %v292
    %vm298 = vc.u32 %v273, %v292
    %v299 = vadd.s32 %v295, 1
    %v300 = vsel %vm298, %v299, %v295
    %v301 = vadd.s32 %v296, %v300
    %v302 = vadd.s32 %v301, 536870912
    %v303 = vshrl.u32 %v302, 30
    %v304 = vshll.u32 %v303, 30
    %v305 = vsub.s32 %v301, %v304
    %vm306 = vcmp.lt.s32.totalorder %v305, 0
    %v307 = vsub.s32 0, %v305
    %v308 = vsel %vm306, %v307, %v305
    %v309 = vclz %v308
    %v310 = vsub.s32 %v309, 2
    %vm311 = vcmp.gt.s32.totalorder 0, %v310
    %v312 = vsel %vm311, 0, %v310
    %v313 = vsub.s32 32, %v312
    %v314 = vshll.u32 %v305, %v312
    %v315 = vshrl.u32 %v297, %v313
    %v316 = vor.u32 %v314, %v315
    %v317 = vsub.s32 4294967266, %v312
    %v318 = vadd.s32 %v317, 127
    %v319 = vshll.u32 %v318, 23
    %v320 = vor.u32 4788187, %v319
    %v321 = vand.u32 2147483647, %v320
    %v323 = vcvt.s32.f32 %v316
    %v324 = vmul.f32 %v323, %v321
    %v325 = vxor.u32 %v324, 2147483648
    %v326 = vsel %vm205, %v325, %v324
    %v327 = vsub.s32 4, %v303
    %v328 = vsel %vm205, %v327, %v303
    %v329 = vsel %vm204, %v48, %v326
    %v330 = vsel %vm204, 0, %v328
    %v331 = vmul.f32 %v329, %v329
    %v332 = vmul.f32 %v331, -0.001358992
    %v333 = vadd.f32 %v332, 0.041655596
    %v334 = vmul.f32 %v331, %v333
    %v335 = vadd.f32 %v334, -0.4999988
    %v336 = vmul.f32 %v331, %v335
    %v337 = vadd.f32 1.0, %v336
    %v338 = vmul.f32 %v329, %v329
    %v339 = vmul.f32 %v338, -0.00019511016
    %v340 = vadd.f32 %v339, 0.008332121
    %v341 = vmul.f32 %v338, %v340
    %v342 = vadd.f32 %v341, -0.16666654
    %v343 = vmul.f32 %v338, %v342
    %v344 = vadd.f32 %v343, 1.0
    %v345 = vmul.f32 %v344, %v329
    %vm346 = vweird.f32 %v48
    %v347 = vadd.s32 %v330, 3
    %v348 = vand.u32 %v347, 3
    %vm349 = vcmp.lt.s32.totalorder %v348, 2
    %vm350 = vcmp.eq.s32.totalorder %v348, 0
    %v351 = vxor.u32 %v345, 2147483648
    %v352 = vsel %vm350, %v337, %v351
    %vm353 = vcmp.eq.s32.totalorder %v348, 2
    %v354 = vxor.u32 %v337, 2147483648
    %v355 = vsel %vm353, %v354, %v345
    %v356 = vsel %vm349, %v352, %v355
    %v357 = vsel %vm346, nan, %v356
    %v358 = vlaneseq
    %v359 = vand.u32 %v358, 127
    %v360 = vshra.s32 %v359, 3
    %v361 = vand.u32 %v360, 1
    %v362 = vcvt.s32.f32 %v361
    %364 = vset.pattern.permute.xlu0 0
    %365 = vperm.xlu0 %364, %v202
    %v366 = vpop.permute.xlu0 %365
    %369 = vset.pattern.permute.xlu0 0
    %370 = vperm.xlu0 %369, %v357
    %v371 = vpop.permute.xlu0 %370
    %v373 = vsub.f32 %v371, %v366
    %v374 = vmul.f32 %v373, %v362
    %v375 = vadd.f32 %v366, %v374
    %v376 = vshra.s32 %v359, 2
    %v377 = vand.u32 %v376, 1
    %v378 = vcvt.s32.f32 %v377
    %379 = vset.pattern.permute.xlu0 1
    %380 = vperm.xlu0 %379, %v202
    %v381 = vpop.permute.xlu0 %380
    %383 = vset.pattern.permute.xlu0 1
    %384 = vperm.xlu0 %383, %v357
    %v385 = vpop.permute.xlu0 %384
    %v387 = vsub.f32 %v385, %v381
    %v388 = vmul.f32 %v387, %v378
    %v389 = vadd.f32 %v381, %v388
    %v390 = vmul.f32 %v375, %v389
    %v391 = vshra.s32 %v359, 1
    %v392 = vand.u32 %v391, 1
    %v393 = vcvt.s32.f32 %v392
    %394 = vset.pattern.permute.xlu0 2
    %395 = vperm.xlu0 %394, %v202
    %v396 = vpop.permute.xlu0 %395
    %398 = vset.pattern.permute.xlu0 2
    %399 = vperm.xlu0 %398, %v357
    %v400 = vpop.permute.xlu0 %399
    %v402 = vsub.f32 %v400, %v396
    %v403 = vmul.f32 %v402, %v393
    %v404 = vadd.f32 %v396, %v403
    %v405 = vmul.f32 %v390, %v404
    %v406 = vand.u32 %v359, 1
    %v407 = vcvt.s32.f32 %v406
    %408 = vset.pattern.permute.xlu0 3
    %409 = vperm.xlu0 %408, %v202
    %v410 = vpop.permute.xlu0 %409
    %412 = vset.pattern.permute.xlu0 3
    %413 = vperm.xlu0 %412, %v357
    %v414 = vpop.permute.xlu0 %413
    %v416 = vsub.f32 %v414, %v410
    %v417 = vmul.f32 %v416, %v407
    %v418 = vadd.f32 %v410, %v417
    %v419 = vmul.f32 %v405, %v418
    %v420 = vld [vmem:[#allocation2] sm:$0xff]
    %v421 = vld [vmem:[#allocation2 + $0x8] sm:$0xff]
    %vm422 = vcmask 130048
    %v424 = vsel %vm422, %v419, 0
    %426 = vmatpush.msra.mxu0 0.0
    %427 = vmatpush.msra.mxu0 0.0
    %428 = vmatpush.msra.mxu0 0.0
    %429 = vmatpush.msra.mxu0 0.0
    %430 = vmatpush.msra.mxu0 0.0
    %431 = vmatpush.msra.mxu0 0.0
    %432 = vmatpush.msra.mxu0 0.0
    %433 = vmatpush.msra.mxu0 0.0
    %434 = vmatpush.msra.mxu0 0.0
    %435 = vmatpush.msra.mxu0 0.0
    %436 = vmatpush.msra.mxu0 0.0
    %437 = vmatpush.msra.mxu0 0.0
    %438 = vmatpush.msra.mxu0 0.0
    %439 = vmatpush.msra.mxu0 0.0
    %440 = vmatpush.msra.mxu0 %v421
    %441 = vmatpush.msra.mxu0 %v420
    %442 = vmatmul.f32.gmra.mxu0 %v424
    %v443 = vpop.f32.mrf.mxu0
    %v444 = vadd.f32 0.0, %v443
    %445 = vdwg.mxu0
    %v446 = vmul.f32 %v444, %v444
    %v447 = vld [vmem:[#allocation5] sm:$0xff]
    %v448 = vld [vmem:[#allocation5 + $0x8] sm:$0xff]
    %v449 = vld [vmem:[#allocation5 + $0x10] sm:$0xff]
    %v450 = vld [vmem:[#allocation5 + $0x18] sm:$0xff]
    %vm451 = vcmask 261120
    %v453 = vsel %vm451, %v446, 0
    %455 = vmatpush.msra.mxu0 0.0
    %456 = vmatpush.msra.mxu0 0.0
    %457 = vmatpush.msra.mxu0 0.0
    %458 = vmatpush.msra.mxu0 0.0
    %459 = vmatpush.msra.mxu0 0.0
    %460 = vmatpush.msra.mxu0 0.0
    %461 = vmatpush.msra.mxu0 0.0
    %462 = vmatpush.msra.mxu0 0.0
    %463 = vmatpush.msra.mxu0 0.0
    %464 = vmatpush.msra.mxu0 0.0
    %465 = vmatpush.msra.mxu0 0.0
    %466 = vmatpush.msra.mxu0 0.0
    %467 = vmatpush.msra.mxu0 %v450
    %468 = vmatpush.msra.mxu0 %v449
    %469 = vmatpush.msra.mxu0 %v448
    %470 = vmatpush.msra.mxu0 %v447
    %471 = vmatmul.f32.gmra.mxu0 %v453
    %v472 = vpop.f32.mrf.mxu0
    %v473 = vadd.f32 0.0, %v472
    %474 = vdwg.mxu0
    %475 = vst [vmem:[#allocation7] sm:$0xff] %v473
    // Predicated region
    $region22: #{tpu_custom_call.1} parent=1 // pred_check
      _
    $region23: #{tpu_custom_call.1} parent=1 // pred_check_branch
      %477 = sbr.rel (0) target = $region25
    $region24: #{tpu_custom_call.1} parent=1 // pred_region
      %479 = vsyncadd [#allocation4], 0
      %s481 = sshll.u32 [#allocation7], 4
      %s482 = int_to_ptr.vmem [resolvable:$true] %s481
      %s483 = sshll.u32 %s3, 4
      %s484 = int_to_ptr.hbm [resolvable:$true] %s483
      %486 = dma.vmem_to_hbm [thread:$0]  %s482, 128, %s484, [#allocation4]
    $region25: #{tpu_custom_call.1} parent=1 // pred_fallthru
      _
    // Predicated region
    $region26: #{tpu_custom_call.1} parent=1 // pred_check
      _
    $region27: #{tpu_custom_call.1} parent=1 // pred_check_branch
      %488 = sbr.rel (0) target = $region29
    $region28: #{tpu_custom_call.1} parent=1 // pred_region
      %490 = dma.done [#allocation4], 128
    $region29: #{tpu_custom_call.1} parent=1 // pred_fallthru
      _
    %491 = vsyncpa [#allocation3], 1
    %492 = vsyncpa [#allocation6], 1
    %493 = vsyncpa [#allocation4], 1

</llo_original>
